<compile_context>
chip_gen: v6e
topology: v6e:2x2x1
jax: 0.10.0
libtpu: 0.0.40
codegen_flags: <defaults>
</compile_context>

<pallas_src>
import numpy as np
import jax
import jax.numpy as jnp
from jax.experimental import pallas as pl
from jax.experimental.pallas import tpu as pltpu


# ------------------------- config-derived constants -------------------------
# config.diffusion.temp_range is not supplied with the module; use a typical
# cosine-schedule range.
MIN_TEMP, MAX_TEMP = 1e-3, 1e3
_TAU_MIN = 2.0 * np.arctan(MIN_TEMP ** 0.5) / np.pi
_TAU_MAX = 2.0 * np.arctan(MAX_TEMP ** 0.5) / np.pi
SCHED_SCALE = 0.5 * np.pi * (_TAU_MAX - _TAU_MIN)    # CosineNoiseScheduler.scale
SCHED_SHIFT = 0.5 * np.pi * _TAU_MIN                 # CosineNoiseScheduler.shift

LANES = 128
_TARGET_BLOCK_BYTES = 2 << 20   # ~2 MiB per array per grid step (v7x-safe)


def _round_up(x, m):
    return ((x + m - 1) // m) * m


# --------------------------------- kernel -----------------------------------
def _make_kernel(batch_axis):
    def kernel(sqrt_ab_ref, sqrt_omb_ref, x0_ref, eps_ref, xt_ref):
        # sqrt_ab_ref / sqrt_omb_ref: (B,) f32 in SMEM (scalar prefetch)
        # x0_ref / eps_ref / xt_ref: (tile_r, 128) blocks in the native dtype
        b = pl.program_id(batch_axis)
        sab = sqrt_ab_ref[b]                       # per-batch scalar from SMEM
        somb = sqrt_omb_ref[b]
        x0 = x0_ref[...].astype(jnp.float32)
        eps = eps_ref[...].astype(jnp.float32)
        xt_ref[...] = (sab * x0 + somb * eps).astype(xt_ref.dtype)
    return kernel


# -------------------------------- wrapper ------------------------------------
@jax.jit
def diffusion_dynamic_forward(key, x0):
    """Mirrors DiffusionDynamic.forward(x0) -> (tau, eps, xt)."""
    B = x0.shape[0]
    D = int(np.prod(x0.shape[1:]))
    itemsize = np.dtype(x0.dtype).itemsize

    # Packed sublane tile of the streamed dtype: f32 -> 8, bf16 -> 16, int8 -> 32.
    row_quant = max(8, 32 // itemsize)

    R_raw = pl.cdiv(D, LANES)                      # 128-lane rows needed
    target_rows = max(row_quant,
                      (_TARGET_BLOCK_BYTES // (LANES * itemsize))
                      // row_quant * row_quant)
    tile_r = min(target_rows, _round_up(R_raw, row_quant))  # multiple of row_quant
    R = _round_up(R_raw, tile_r)                   # padded rows, divides evenly
    Dp = R * LANES
    n_tiles = R // tile_r

    k_tau, k_eps = jax.random.split(key)
    tau = jax.random.uniform(k_tau, (B,), dtype=jnp.float32)        # torch.rand

    # CosineNoiseScheduler.forward + get_alpha_bar_from_log_temp, hoisted out of
    # the per-tile body (tiny per-batch scalar math).
    log_temp = jnp.log(jnp.tan(tau * SCHED_SCALE + SCHED_SHIFT)) * 2.0
    alpha_bar = jax.nn.sigmoid(-log_temp)                           # (B,)
    sqrt_ab = jnp.sqrt(alpha_bar).astype(jnp.float32)
    sqrt_omb = jnp.sqrt(1.0 - alpha_bar).astype(jnp.float32)

    # eps ~ N(0,1) generated directly in the padded lane-dense layout
    # (torch.randn_like semantics: same dtype as x0).
    eps_3d = jax.random.normal(k_eps, (B, R, LANES), dtype=x0.dtype)

    # x0 flattened to 128-wide rows; zero-pad the tail only if needed.
    x0_flat = x0.reshape(B, D)
    if Dp != D:
        x0_flat = jnp.pad(x0_flat, ((0, 0), (0, Dp - D)))
    x0_3d = x0_flat.reshape(B, R, LANES)

    # Put the larger parallel axis first (megacore balance on v7x).
    if B >= n_tiles:
        grid = (B, n_tiles)
        batch_axis = 0
        idx = lambda b, j, *_: (b, j, 0)
    else:
        grid = (n_tiles, B)
        batch_axis = 1
        idx = lambda j, b, *_: (b, j, 0)

    blk = pl.BlockSpec((None, tile_r, LANES), idx)

    xt_3d = pl.pallas_call(
        _make_kernel(batch_axis),
        out_shape=jax.ShapeDtypeStruct((B, R, LANES), x0.dtype),
        grid_spec=pltpu.PrefetchScalarGridSpec(
            num_scalar_prefetch=2,            # sqrt_ab, sqrt_omb -> SMEM
            grid=grid,
            in_specs=[blk, blk],              # x0 tiles, eps tiles
            out_specs=blk,                    # xt tiles
        ),
        compiler_params=pltpu.CompilerParams(
            dimension_semantics=("parallel", "parallel"),
            vmem_limit_bytes=32 * 1024 * 1024),
    )(sqrt_ab, sqrt_omb, x0_3d, eps_3d)

    eps = eps_3d.reshape(B, Dp)[:, :D].reshape(x0.shape)
    xt = xt_3d.reshape(B, Dp)[:, :D].reshape(x0.shape)
    return tau, eps, xt


# ------------------------------ reference -----------------------------------
def _reference_xt(tau, eps, x0):
    log_temp = jnp.log(jnp.tan(tau * SCHED_SCALE + SCHED_SHIFT)) * 2.0
    alpha_bar = jax.nn.sigmoid(-log_temp).reshape((-1,) + (1,) * (x0.ndim - 1))
    return (jnp.sqrt(alpha_bar) * x0.astype(jnp.float32)
            + eps.astype(jnp.float32) * jnp.sqrt(1.0 - alpha_bar))


if __name__ == "__main__":
    key = jax.random.PRNGKey(0)
    k_x0, k_fwd = jax.random.split(key)

    # x0 in NCHW: (batch=2, channels=4, spatial=16x16) -> obj_size=(4,16,16)
    x0 = jax.random.normal(k_x0, (2, 4, 16, 16), dtype=jnp.float32)

    tau, eps, xt = diffusion_dynamic_forward(k_fwd, x0)
    jax.block_until_ready((tau, eps, xt))

    assert tau.shape == (2,) and eps.shape == x0.shape and xt.shape == x0.shape

    # xt must be consistent with the returned (tau, eps) and the input x0.
    xt_ref = _reference_xt(tau, eps, x0)
    np.testing.assert_allclose(np.asarray(xt, dtype=np.float32),
                               np.asarray(xt_ref), rtol=1e-5, atol=1e-5)

    # Loose sanity check on the noise.
    e = np.asarray(eps, dtype=np.float32).ravel()
    assert np.isfinite(e).all()
    assert abs(e.mean()) < 0.2 and 0.8 < e.std() < 1.2

    print("KERNEL_OK")
</pallas_src>

<mosaic_0001>
module attributes {stable_mosaic.version = 11 : i64} {
  func.func @kernel(%arg0: i32, %arg1: i32, %arg2: memref<2xf32, #tpu.memory_space<smem>>, %arg3: memref<2xf32, #tpu.memory_space<smem>>, %arg4: memref<1x8x128xf32, #tpu.memory_space<vmem>>, %arg5: memref<1x8x128xf32, #tpu.memory_space<vmem>>, %arg6: memref<1x8x128xf32, #tpu.memory_space<vmem>>) attributes {dimension_semantics = [#tpu.dimension_semantics<parallel>, #tpu.dimension_semantics<parallel>], iteration_bounds = array<i64: 2, 1>, scalar_prefetch = 2 : i64, scratch_operands = 0 : i64, tpu.core_type = #tpu.core_type<tc>, window_params = [{transform_indices = @transform_0, window_bounds = array<i64: 1, 8, 128>}, {transform_indices = @transform_1, window_bounds = array<i64: 1, 8, 128>}, {transform_indices = @transform_2, window_bounds = array<i64: 1, 8, 128>}]} {
    %0 = arith.index_cast %arg0 : i32 to index
    %1 = memref.load %arg2[%0] : memref<2xf32, #tpu.memory_space<smem>>
    %2 = arith.index_cast %arg0 : i32 to index
    %3 = memref.load %arg3[%2] : memref<2xf32, #tpu.memory_space<smem>>
    %c0 = arith.constant 0 : index
    %c0_0 = arith.constant 0 : index
    %c0_1 = arith.constant 0 : index
    %4 = vector.load %arg4[%c0, %c0_0, %c0_1] : memref<1x8x128xf32, #tpu.memory_space<vmem>>, vector<1x8x128xf32>
    %5 = vector.shape_cast %4 : vector<1x8x128xf32> to vector<8x128xf32>
    %c0_2 = arith.constant 0 : index
    %c0_3 = arith.constant 0 : index
    %c0_4 = arith.constant 0 : index
    %6 = vector.load %arg5[%c0_2, %c0_3, %c0_4] : memref<1x8x128xf32, #tpu.memory_space<vmem>>, vector<1x8x128xf32>
    %7 = vector.shape_cast %6 : vector<1x8x128xf32> to vector<8x128xf32>
    %8 = vector.broadcast %1 : f32 to vector<8x128xf32>
    %9 = arith.mulf %8, %5 : vector<8x128xf32>
    %10 = vector.broadcast %3 : f32 to vector<8x128xf32>
    %11 = arith.mulf %10, %7 : vector<8x128xf32>
    %12 = arith.addf %9, %11 : vector<8x128xf32>
    %c0_5 = arith.constant 0 : index
    %c0_6 = arith.constant 0 : index
    %c0_7 = arith.constant 0 : index
    %13 = vector.load %arg6[%c0_5, %c0_6, %c0_7] : memref<1x8x128xf32, #tpu.memory_space<vmem>>, vector<1x8x128xf32>
    %14 = vector.shape_cast %13 : vector<1x8x128xf32> to vector<8x128xf32>
    %15 = vector.shape_cast %12 : vector<8x128xf32> to vector<1x8x128xf32>
    tpu.vector_store %arg6[%c0_5, %c0_6, %c0_7], %15 {strides = array<i32>} : memref<1x8x128xf32, #tpu.memory_space<vmem>>, vector<1x8x128xf32>,
    return
  }
  func.func @transform_0(%arg0: i32, %arg1: i32, %arg2: memref<2xf32, #tpu.memory_space<smem>>, %arg3: memref<2xf32, #tpu.memory_space<smem>>) -> (i32, i32, i32) {
    %c0_i32 = arith.constant 0 : i32
    %c0_i32_0 = arith.constant 0 : i32
    return %arg0, %arg1, %c0_i32 : i32, i32, i32
  }
  func.func @transform_1(%arg0: i32, %arg1: i32, %arg2: memref<2xf32, #tpu.memory_space<smem>>, %arg3: memref<2xf32, #tpu.memory_space<smem>>) -> (i32, i32, i32) {
    %c0_i32 = arith.constant 0 : i32
    %c0_i32_0 = arith.constant 0 : i32
    return %arg0, %arg1, %c0_i32 : i32, i32, i32
  }
  func.func @transform_2(%arg0: i32, %arg1: i32, %arg2: memref<2xf32, #tpu.memory_space<smem>>, %arg3: memref<2xf32, #tpu.memory_space<smem>>) -> (i32, i32, i32) {
    %c0_i32 = arith.constant 0 : i32
    %c0_i32_0 = arith.constant 0 : i32
    return %arg0, %arg1, %c0_i32 : i32, i32, i32
  }
}

</mosaic_0001>

<llo_original>
// kernel: diffusion_dynamic_forward.11
$region0: #{diffusion_dynamic_forward.11}
  #allocation0 [shape = 'u32[]', space=smem, size = 0x4, offset = 0x4, fixed_abs, tag = 'smem constant byte address 0x4 - core index']
  #allocation1 [shape = 'u32[144,128]{1,0:T(1,128)}', space=vmem, size = 0x12000, scoped, tag = 'internal scratch']
  #allocation2 [shape = 's32[1]{0}', space=sflag, size = 0x4, scoped, tag = 'scoped memory for diffusion_dynamic_forward.11']
  #allocation3 [shape = 'u8[512]{0}', space=smem, size = 0x200, scoped, tag = 'prefetched SMEM operand 0']
  #allocation4 [shape = 'u8[512]{0}', space=smem, size = 0x200, scoped, tag = 'prefetched SMEM operand 1']
  %s0 = inlined_call_operand.vmem [shape: f32[2], index: 0, kind: input, shape index: {}]
  %s1 = inlined_call_operand.vmem [shape: f32[2], index: 1, kind: input, shape index: {}]
  %s2 = inlined_call_operand.vmem [shape: f32[2,8,128], index: 2, kind: input, shape index: {}]
  %s3 = inlined_call_operand.vmem [shape: f32[2,8,128], index: 3, kind: input, shape index: {}]
  %s4 = inlined_call_operand.vmem [shape: f32[2,8,128], index: 4, kind: output, shape index: {}]
  %s5 = sld [smem:[#allocation0]]
  $region41: #{diffusion_dynamic_forward.11} parent=0
    _
  %s7 = ssub.s32 1, %s5
  %s8 = scalar_select 0, %s7, %s5
  %s9 = sshll.u32 %s0, 4
  %s10 = int_to_ptr.vmem [resolvable:$true] %s9
  %12 = dma.vmem_to_smem %s10, 16, [#allocation3], [#allocation2]
  %s13 = sshll.u32 %s1, 4
  %s14 = int_to_ptr.vmem [resolvable:$true] %s13
  %16 = dma.vmem_to_smem %s14, 16, [#allocation4], [#allocation2]
  %17 = dma.done [#allocation2], 32
  %18 = sfence
  loop: start=0, step=1, limit=4
  $region2: #{diffusion_dynamic_forward.11} parent=0 // loop_pre_header
    _
  $region3: #{diffusion_dynamic_forward.11} parent=0 // loop_header
    %s20 = sphi 0, %s24
    %p21 = scmp.ge.s32.totalorder %s20, 4
    %s27 = sphi 0, %s39
    %s28 = sphi 0, %s35
    %s29 = sphi 0, %s27
    %s30 = sphi 0, %s28
    %s31 = sphi 0, %s29
    %s32 = sphi 0, %s30
    %s44 = sphi 0, %s46
    %s47 = sphi 0, %s44
    %s48 = sphi 0, %s47
    %s64 = sphi 0, %s48
    %s72 = sphi 0, %s74
    %s75 = sphi 0, %s72
    %s76 = sphi 0, %s75
    %s92 = sphi 0, %s76
    %s100 = sphi 0, %s102
    %s103 = sphi 0, %s100
    %s104 = sphi 0, %s103
    %s120 = sphi 0, %s104
  $region4: #{diffusion_dynamic_forward.11} parent=0 // loop_header_branch
    %23 = sbr.rel (%p21) target = $region8
  $region5: #{diffusion_dynamic_forward.11} parent=0 // loop_body
    %s25 = ssub.s32 %s20, 1
    %s26 = ssub.s32 %s20, 2
    %s33 = sadd.s32 1, %s28
    %p34 = scmp.ge.s32.totalorder %s33, 1
    %s35 = scalar_select %p34, 0, %s33
    %s36 = sadd.s32 1, %s27
    %s37 = scalar_select %p34, %s36, %s27
    %p38 = scmp.ge.s32.totalorder %s37, 2
    %s39 = scalar_select %p38, 0, %s37
    %s40 = ssub.s32 %s27, %s39
    %s41 = ssub.s32 %s28, %s35
    %s42 = sor.u32 %s40, %s41
    %p43 = scmp.eq.s32.totalorder %s42, 0
    %s45 = sadd.s32 %s44, 1
    %s46 = scalar_select %p43, %s44, %s45
    %p49 = pneg %p43
    %p50 = scmp.eq.s32.totalorder %s20, 1
    %p51 = por %p49, %p50
    %p52 = scmp.ne.s32.totalorder %s44, %s47
    %p53 = scmp.eq.s32.totalorder %s20, 0
    %p54 = por %p52, %p53
    %p55 = scmp.ne.s32.totalorder %s44, %s47
    %p56 = scmp.eq.s32.totalorder %s25, 1
    %p57 = por %p55, %p56
    %p58 = scmp.ne.s32.totalorder %s47, %s48
    %p59 = scmp.eq.s32.totalorder %s25, 0
    %p60 = por %p58, %p59
    %p61 = scmp.ne.s32.totalorder %s47, %s48
    %p62 = scmp.eq.s32.totalorder %s26, 1
    %p63 = por %p61, %p62
    %p65 = scmp.ne.s32.totalorder %s48, %s64
    %p66 = scmp.eq.s32.totalorder %s26, 0
    %p67 = por %p65, %p66
    %s68 = ssub.s32 %s27, %s39
    %s69 = ssub.s32 %s28, %s35
    %s70 = sor.u32 %s68, %s69
    %p71 = scmp.eq.s32.totalorder %s70, 0
    %s73 = sadd.s32 %s72, 1
    %s74 = scalar_select %p71, %s72, %s73
    %p77 = pneg %p71
    %p78 = scmp.eq.s32.totalorder %s20, 1
    %p79 = por %p77, %p78
    %p80 = scmp.ne.s32.totalorder %s72, %s75
    %p81 = scmp.eq.s32.totalorder %s20, 0
    %p82 = por %p80, %p81
    %p83 = scmp.ne.s32.totalorder %s72, %s75
    %p84 = scmp.eq.s32.totalorder %s25, 1
    %p85 = por %p83, %p84
    %p86 = scmp.ne.s32.totalorder %s75, %s76
    %p87 = scmp.eq.s32.totalorder %s25, 0
    %p88 = por %p86, %p87
    %p89 = scmp.ne.s32.totalorder %s75, %s76
    %p90 = scmp.eq.s32.totalorder %s26, 1
    %p91 = por %p89, %p90
    %p93 = scmp.ne.s32.totalorder %s76, %s92
    %p94 = scmp.eq.s32.totalorder %s26, 0
    %p95 = por %p93, %p94
    %s96 = ssub.s32 %s27, %s39
    %s97 = ssub.s32 %s28, %s35
    %s98 = sor.u32 %s96, %s97
    %p99 = scmp.eq.s32.totalorder %s98, 0
    %s101 = sadd.s32 %s100, 1
    %s102 = scalar_select %p99, %s100, %s101
    %p105 = pneg %p99
    %p106 = scmp.eq.s32.totalorder %s20, 1
    %p107 = por %p105, %p106
    %p108 = scmp.ne.s32.totalorder %s100, %s103
    %p109 = scmp.eq.s32.totalorder %s20, 0
    %p110 = por %p108, %p109
    %p111 = scmp.ne.s32.totalorder %s100, %s103
    %p112 = scmp.eq.s32.totalorder %s25, 1
    %p113 = por %p111, %p112
    %p114 = scmp.ne.s32.totalorder %s103, %s104
    %p115 = scmp.eq.s32.totalorder %s25, 0
    %p116 = por %p114, %p115
    %p117 = scmp.ne.s32.totalorder %s103, %s104
    %p118 = scmp.eq.s32.totalorder %s26, 1
    %p119 = por %p117, %p118
    %p121 = scmp.ne.s32.totalorder %s104, %s120
    %p122 = scmp.eq.s32.totalorder %s26, 0
    %p123 = por %p121, %p122
    %p124 = scmp.le.s32.totalorder 1, %s20
    %p125 = scmp.lt.s32.totalorder %s20, 3
    %p126 = pnand %p124, %p125
    %p127 = pneg %p126
    // Predicated region
    $region9: #{diffusion_dynamic_forward.11} parent=5 // pred_check
      _
    $region10: #{diffusion_dynamic_forward.11} parent=5 // pred_check_branch
      %129 = sbr.rel (%p126) target = $region12
    $region11: #{diffusion_dynamic_forward.11} parent=5 // pred_region
      %s130 = ssub.s32 %s20, 1
    $region12: #{diffusion_dynamic_forward.11} parent=5 // pred_fallthru
      _
    %p131 = scmp.lt.s32.totalorder %s20, 2
    // Predicated region
    $region13: #{diffusion_dynamic_forward.11} parent=5 // pred_check
      %p132 = pneg %p131
    $region14: #{diffusion_dynamic_forward.11} parent=5 // pred_check_branch
      %134 = sbr.rel (%p132) target = $region16
    $region15: #{diffusion_dynamic_forward.11} parent=5 // pred_region
      // Predicated region
      $region17: #{diffusion_dynamic_forward.11} parent=15 // pred_check
        %p135 = pneg %p54
      $region18: #{diffusion_dynamic_forward.11} parent=15 // pred_check_branch
        %137 = sbr.rel (%p135) target = $region20
      $region19: #{diffusion_dynamic_forward.11} parent=15 // pred_region
        %p138 = scmp.lt.s32.totalorder %s27, 1
        %s139 = scalar_select %p138, %s27, 1
        %p140 = scmp.lt.s32.totalorder %s28, 0
        %s141 = scalar_select %p140, %s28, 0
        %s142 = sadd.s32 %s141, %s139
        %s143 = smul.addr %s142, 8
        %s144 = scalar_lea.vmem %s2, %s143
      $region20: #{diffusion_dynamic_forward.11} parent=15 // pred_fallthru
        _
      // Predicated region
      $region21: #{diffusion_dynamic_forward.11} parent=15 // pred_check
        %p145 = pneg %p82
      $region22: #{diffusion_dynamic_forward.11} parent=15 // pred_check_branch
        %147 = sbr.rel (%p145) target = $region24
      $region23: #{diffusion_dynamic_forward.11} parent=15 // pred_region
        %p148 = scmp.lt.s32.totalorder %s27, 1
        %s149 = scalar_select %p148, %s27, 1
        %p150 = scmp.lt.s32.totalorder %s28, 0
        %s151 = scalar_select %p150, %s28, 0
        %s152 = sadd.s32 %s151, %s149
        %s153 = smul.addr %s152, 8
        %s154 = scalar_lea.vmem %s3, %s153
      $region24: #{diffusion_dynamic_forward.11} parent=15 // pred_fallthru
        _
    $region16: #{diffusion_dynamic_forward.11} parent=5 // pred_fallthru
      _
    %p155 = scmp.le.s32.totalorder 1, %s20
    %p156 = scmp.lt.s32.totalorder %s20, 3
    %p157 = pnand %p155, %p156
    %p158 = pneg %p157
    // Predicated region
    $region25: #{diffusion_dynamic_forward.11} parent=5 // pred_check
      _
    $region26: #{diffusion_dynamic_forward.11} parent=5 // pred_check_branch
      %160 = sbr.rel (%p157) target = $region28
    $region27: #{diffusion_dynamic_forward.11} parent=5 // pred_region
      %s161 = ssub.s32 %s20, 1
      %p162 = scmp.lt.s32.totalorder %s29, 1
      %s163 = scalar_select %p162, %s29, 1
      %p164 = scmp.lt.s32.totalorder %s30, 0
      %s165 = scalar_select %p164, %s30, 0
      %s166 = sadd.s32 %s165, %s163
      %s167 = smul.addr %s166, 8
      %s168 = scalar_lea.vmem %s2, %s167
      %p169 = pneg %p60
      %p170 = pneg %p57
      %p171 = scmp.lt.s32.totalorder %s29, 1
      %s172 = scalar_select %p171, %s29, 1
      %p173 = scmp.lt.s32.totalorder %s30, 0
      %s174 = scalar_select %p173, %s30, 0
      %s175 = sadd.s32 %s174, %s172
      %s176 = smul.addr %s175, 8
      %s177 = scalar_lea.vmem %s3, %s176
      %p178 = pneg %p88
      %p179 = pneg %p85
      %p180 = pneg %p116
      %p181 = pneg %p113
      %p182 = scmp.lt.s32.totalorder %s29, 1
      %s183 = scalar_select %p182, %s29, 1
      %p184 = scmp.lt.s32.totalorder %s30, 0
      %s185 = scalar_select %p184, %s30, 0
      %s186 = sadd.s32 %s185, %s183
      %s187 = smul.addr %s186, 8
      %s188 = scalar_lea.vmem %s4, %s187
      %p189 = scmp.lt.s32.totalorder %s29, 1
      %s190 = scalar_select %p189, %s29, 1
      %p191 = scmp.lt.s32.totalorder %s30, 0
      %s192 = scalar_select %p191, %s30, 0
      %s193 = sadd.s32 %s192, %s190
      %s194 = smul.addr %s193, 8
      %s195 = scalar_lea.vmem %s2, %s194
      %p196 = scmp.lt.s32.totalorder %s29, 1
      %s197 = scalar_select %p196, %s29, 1
      %p198 = scmp.lt.s32.totalorder %s30, 0
      %s199 = scalar_select %p198, %s30, 0
      %s200 = sadd.s32 %s199, %s197
      %s201 = smul.addr %s200, 8
      %s202 = scalar_lea.vmem %s3, %s201
      %p203 = scmp.lt.s32.totalorder %s29, 1
      %s204 = scalar_select %p203, %s29, 1
      %p205 = scmp.lt.s32.totalorder %s30, 0
      %s206 = scalar_select %p205, %s30, 0
      %s207 = sadd.s32 %s206, %s204
      %s208 = smul.addr %s207, 8
      %s209 = scalar_lea.vmem %s4, %s208
      %s210 = sld [smem:[#allocation3 + %s29]]
      %s211 = sld [smem:[#allocation4 + %s29]]
      %v212 = vld [vmem:[%s195] sm:$0xff]
      %v213 = vld [vmem:[%s202] sm:$0xff]
      %v214 = vstv %s210
      %v215 = vmul.f32 %v214, %v212
      %v216 = vstv %s211
      %v217 = vmul.f32 %v216, %v213
      %v218 = vadd.f32 %v215, %v217
      %219 = vst [vmem:[%s209] sm:$0xff] %v218
      %p220 = scmp.lt.s32.totalorder %s29, 1
      %s221 = scalar_select %p220, %s29, 1
      %p222 = scmp.lt.s32.totalorder %s30, 0
      %s223 = scalar_select %p222, %s30, 0
      %s224 = sadd.s32 %s223, %s221
      %s225 = smul.addr %s224, 8
      %s226 = scalar_lea.vmem %s4, %s225
      // Predicated region
      $region29: #{diffusion_dynamic_forward.11} parent=27 // pred_check
        %p227 = pneg %p113
      $region30: #{diffusion_dynamic_forward.11} parent=27 // pred_check_branch
        %229 = sbr.rel (%p227) target = $region32
      $region31: #{diffusion_dynamic_forward.11} parent=27 // pred_region
        _
      $region32: #{diffusion_dynamic_forward.11} parent=27 // pred_fallthru
        _
    $region28: #{diffusion_dynamic_forward.11} parent=5 // pred_fallthru
      _
    %p230 = scmp.le.s32.totalorder 2, %s20
    // Predicated region
    $region33: #{diffusion_dynamic_forward.11} parent=5 // pred_check
      %p231 = pneg %p230
    $region34: #{diffusion_dynamic_forward.11} parent=5 // pred_check_branch
      %233 = sbr.rel (%p231) target = $region36
    $region35: #{diffusion_dynamic_forward.11} parent=5 // pred_region
      %s234 = ssub.s32 %s20, 2
      // Predicated region
      $region37: #{diffusion_dynamic_forward.11} parent=35 // pred_check
        %p235 = pneg %p119
      $region38: #{diffusion_dynamic_forward.11} parent=35 // pred_check_branch
        %237 = sbr.rel (%p235) target = $region40
      $region39: #{diffusion_dynamic_forward.11} parent=35 // pred_region
        %p238 = scmp.lt.s32.totalorder %s31, 1
        %s239 = scalar_select %p238, %s31, 1
        %p240 = scmp.lt.s32.totalorder %s32, 0
        %s241 = scalar_select %p240, %s32, 0
        %s242 = sadd.s32 %s241, %s239
        %s243 = smul.addr %s242, 8
        %s244 = scalar_lea.vmem %s4, %s243
      $region40: #{diffusion_dynamic_forward.11} parent=35 // pred_fallthru
        _
    $region36: #{diffusion_dynamic_forward.11} parent=5 // pred_fallthru
      _
  $region6: #{diffusion_dynamic_forward.11} parent=0 // loop_footer
    %s24 = sadd.s32 1, %s20
  $region7: #{diffusion_dynamic_forward.11} parent=0 // loop_footer_branch
    %19 = sbr.rel target = $region3
  $region8: #{diffusion_dynamic_forward.11} parent=0 // loop_exit
    _

</llo_original>
